<compile_context>
chip_gen: v7x
topology: tpu7x:2x2x1
jax: 0.10.0
libtpu: 0.0.40
codegen_flags: <defaults>
</compile_context>

<pallas_src>
import functools

import jax
import jax.numpy as jnp
from jax import lax
from jax.experimental import pallas as pl
from jax.experimental.pallas import tpu as pltpu


# ---------------------------------------------------------------------------
# Kernel 1 & 3: linear layer  out = x @ W + b   (W stored as (in, out))
# Row (TM) and output-column (TO) tiled, parallel grid, f32 accumulation on MXU.
# ---------------------------------------------------------------------------
def _linear_kernel(x_ref, w_ref, b_ref, o_ref):
    acc = jnp.dot(x_ref[...], w_ref[...], preferred_element_type=jnp.float32)
    o_ref[...] = (acc + b_ref[...].astype(jnp.float32)).astype(o_ref.dtype)


def pallas_linear(x2d, w, b, *, tm=512, to=1024):
    """x2d: (N, K), w: (K, O), b: (O,) -> (N, O)."""
    N, K = x2d.shape
    O = w.shape[1]
    TM = N if N <= tm else tm        # tm is a multiple of 8 (sublane aligned)
    TO = O if O <= to else to        # to is a multiple of 128 (lane aligned)
    b2 = b.reshape(1, O)
    dsize = x2d.dtype.itemsize

    # Size the scoped VMEM limit from the actual double-buffered tile footprint.
    est_vmem = 2 * dsize * (TM * K + K * TO + TM * TO) + 8 * dsize * TO + (2 << 20)
    vmem_limit = int(min(max(est_vmem, 32 * 1024 * 1024), 56 * 1024 * 1024))

    n_row_tiles = pl.cdiv(N, TM)
    n_col_tiles = pl.cdiv(O, TO)
    cost = pl.CostEstimate(
        flops=2 * N * K * O,
        transcendentals=0,
        bytes_accessed=dsize * (N * K * n_col_tiles + K * O * n_row_tiles + N * O),
    )
    return pl.pallas_call(
        _linear_kernel,
        out_shape=jax.ShapeDtypeStruct((N, O), x2d.dtype),
        grid=(n_row_tiles, n_col_tiles),
        in_specs=[
            pl.BlockSpec((TM, K), lambda i, j: (i, 0)),
            pl.BlockSpec((K, TO), lambda i, j: (0, j)),
            pl.BlockSpec((1, TO), lambda i, j: (0, j)),
        ],
        out_specs=pl.BlockSpec((TM, TO), lambda i, j: (i, j)),
        compiler_params=pltpu.CompilerParams(
            dimension_semantics=("parallel", "parallel"),
            vmem_limit_bytes=vmem_limit,
        ),
        cost_estimate=cost,
    )(x2d, w, b2)


# ---------------------------------------------------------------------------
# Kernel 2: flash-style attention over head-grouped (B, L, D=nh*hd) slabs.
# Grid (B, q-tiles, kv-tiles); kv axis is the reduction (last, "arbitrary");
# output block resident across kv -> online softmax with f32 m / l / acc
# scratch in VMEM, finalized (exact divide) on the last kv step.
# ---------------------------------------------------------------------------
def _flash_attn_kernel(q_ref, k_ref, v_ref, o_ref, m_ref, l_ref, acc_ref, *,
                       num_heads, head_dim, scale, kv_len, block_kv, mask_kv):
    kt = pl.program_id(2)

    @pl.when(kt == 0)
    def _():
        m_ref[...] = jnp.full_like(m_ref, -jnp.inf)
        l_ref[...] = jnp.zeros_like(l_ref)
        acc_ref[...] = jnp.zeros_like(acc_ref)

    if mask_kv:
        kv_pos = kt * block_kv + lax.broadcasted_iota(jnp.int32, (1, block_kv), 1)
        kv_ok = kv_pos < kv_len                       # (1, TKV), broadcasts over TQ

    for h in range(num_heads):                        # static unroll over heads
        cols = slice(h * head_dim, (h + 1) * head_dim)
        q_h = q_ref[0, :, cols] * scale               # (TQ, hd), input dtype
        k_h = k_ref[0, :, cols]                       # (TKV, hd)
        v_h = v_ref[0, :, cols]                       # (TKV, hd)

        # q @ k^T: contract both last dims -> no k.T relayout, f32 accumulation.
        s = lax.dot_general(
            q_h, k_h, (((1,), (1,)), ((), ())), preferred_element_type=jnp.float32
        )                                             # (TQ, TKV) f32
        if mask_kv:
            s = jnp.where(kv_ok, s, -jnp.inf)

        m_prev = m_ref[:, h:h + 1]                    # (TQ, 1)
        m_new = jnp.maximum(m_prev, jnp.max(s, axis=-1, keepdims=True))
        alpha = jnp.exp(m_prev - m_new)               # rescale for running stats
        p = jnp.exp(s - m_new)                        # (TQ, TKV) f32

        l_ref[:, h:h + 1] = alpha * l_ref[:, h:h + 1] + jnp.sum(
            p, axis=-1, keepdims=True)
        acc_ref[:, cols] = alpha * acc_ref[:, cols] + jnp.dot(
            p.astype(v_h.dtype), v_h, preferred_element_type=jnp.float32)
        m_ref[:, h:h + 1] = m_new

    @pl.when(kt == pl.num_programs(2) - 1)
    def _():
        parts = []
        for h in range(num_heads):
            cols = slice(h * head_dim, (h + 1) * head_dim)
            parts.append(acc_ref[:, cols] / l_ref[:, h:h + 1])   # exact divide, once
        # Single lane-dense (TQ, D) store of the merged-head block.
        o_ref[0] = jnp.concatenate(parts, axis=-1).astype(o_ref.dtype)


def pallas_attention(qkv3, num_heads, head_dim, scale, *, tq=128, tkv=256):
    """qkv3: (B, L, 3*D) fused qkv activation, columns ordered [q | k | v],
    each slab D = num_heads * head_dim with heads concatenated.
    Returns (B, L, D): attention output with heads merged, token-major."""
    B, L, three_d = qkv3.shape
    D = num_heads * head_dim
    assert three_d == 3 * D

    TQ = L if L <= tq else tq          # tq multiple of 8
    TKV = L if L <= tkv else tkv       # tkv multiple of 8
    mask_kv = (L % TKV) != 0

    if D % 128 == 0:
        # Zero-copy: address the q/k/v slabs as lane-dense column blocks of the
        # fused qkv activation (block index 0 / 1 / 2 along the last axis).
        q_in = k_in = v_in = qkv3
        q_spec = pl.BlockSpec((1, TQ, D), lambda b, qt, kt: (b, qt, 0))
        k_spec = pl.BlockSpec((1, TKV, D), lambda b, qt, kt: (b, kt, 1))
        v_spec = pl.BlockSpec((1, TKV, D), lambda b, qt, kt: (b, kt, 2))
    else:
        # D not lane-aligned: take three cheap contiguous last-dim slices (no
        # transposes) so each block's last dim equals the full slab dim.
        q_in = lax.slice_in_dim(qkv3, 0, D, axis=2)
        k_in = lax.slice_in_dim(qkv3, D, 2 * D, axis=2)
        v_in = lax.slice_in_dim(qkv3, 2 * D, 3 * D, axis=2)
        q_spec = pl.BlockSpec((1, TQ, D), lambda b, qt, kt: (b, qt, 0))
        k_spec = pl.BlockSpec((1, TKV, D), lambda b, qt, kt: (b, kt, 0))
        v_spec = pl.BlockSpec((1, TKV, D), lambda b, qt, kt: (b, kt, 0))

    kernel = functools.partial(
        _flash_attn_kernel, num_heads=num_heads, head_dim=head_dim, scale=scale,
        kv_len=L, block_kv=TKV, mask_kv=mask_kv)

    dsize = qkv3.dtype.itemsize
    n_q_tiles = pl.cdiv(L, TQ)
    cost = pl.CostEstimate(
        flops=4 * B * num_heads * L * L * head_dim,
        transcendentals=B * num_heads * L * L,
        bytes_accessed=dsize * B * (L * D                    # q read
                                    + 2 * n_q_tiles * L * D  # k, v re-read per q tile
                                    + L * D),                # output write
    )
    return pl.pallas_call(
        kernel,
        out_shape=jax.ShapeDtypeStruct((B, L, D), qkv3.dtype),
        grid=(B, n_q_tiles, pl.cdiv(L, TKV)),
        in_specs=[q_spec, k_spec, v_spec],
        out_specs=pl.BlockSpec((1, TQ, D), lambda b, qt, kt: (b, qt, 0)),
        scratch_shapes=[
            pltpu.VMEM((TQ, num_heads), jnp.float32),   # running max m (per head)
            pltpu.VMEM((TQ, num_heads), jnp.float32),   # running denom l (per head)
            pltpu.VMEM((TQ, D), jnp.float32),           # running output acc
        ],
        compiler_params=pltpu.CompilerParams(
            dimension_semantics=("parallel", "parallel", "arbitrary")),
        cost_estimate=cost,
    )(q_in, k_in, v_in)


# ---------------------------------------------------------------------------
# Module forward (glue in plain JAX, compute in Pallas kernels above)
# ---------------------------------------------------------------------------
def multi_scale_attention_forward(x, params, num_heads):
    """x: (B, H, W, dim) NHWC. Returns (B, H, W, dim_out)."""
    w_qkv, b_qkv, w_proj, b_proj = (
        params["w_qkv"], params["b_qkv"], params["w_proj"], params["b_proj"]
    )
    B, H, W, dim = x.shape
    dim_out = w_proj.shape[1]
    head_dim = dim_out // num_heads
    scale = head_dim ** (-0.5)
    L = H * W

    # qkv projection: (B*L, dim) @ (dim, 3*dim_out)
    x2d = x.reshape(B * L, dim)
    qkv = pallas_linear(x2d, w_qkv, b_qkv)               # (B*L, 3*dim_out)
    qkv = qkv.reshape(B, L, 3 * dim_out)                 # free reshape; columns = [q|k|v]

    # flash-style scaled dot-product attention on head-grouped slabs (no transposes)
    o = pallas_attention(qkv, num_heads, head_dim, scale)   # (B, L, dim_out)

    # output projection (heads already merged in token-major layout)
    out = pallas_linear(o.reshape(B * L, dim_out), w_proj, b_proj)
    return out.reshape(B, H, W, dim_out)


# ---------------------------------------------------------------------------
# Plain-JAX reference (for a correctness sanity check)
# ---------------------------------------------------------------------------
def reference_forward(x, params, num_heads):
    w_qkv, b_qkv, w_proj, b_proj = (
        params["w_qkv"], params["b_qkv"], params["w_proj"], params["b_proj"]
    )
    B, H, W, dim = x.shape
    dim_out = w_proj.shape[1]
    head_dim = dim_out // num_heads
    scale = head_dim ** (-0.5)
    L = H * W
    qkv = x.reshape(B, L, dim) @ w_qkv + b_qkv
    qkv = qkv.reshape(B, L, 3, num_heads, head_dim)
    q, k, v = (jnp.transpose(qkv[:, :, i], (0, 2, 1, 3)) for i in range(3))
    s = (q * scale) @ jnp.swapaxes(k, -1, -2)
    p = jax.nn.softmax(s, axis=-1)
    o = p @ v
    o = jnp.transpose(o, (0, 2, 1, 3)).reshape(B, L, dim_out)
    return (o @ w_proj + b_proj).reshape(B, H, W, dim_out)


if __name__ == "__main__":
    # Small, module-consistent shapes.
    B, H, W = 2, 8, 8
    dim, dim_out, num_heads = 32, 32, 4

    key = jax.random.PRNGKey(0)
    k_x, k_wq, k_bq, k_wp, k_bp = jax.random.split(key, 5)

    x = jax.random.normal(k_x, (B, H, W, dim), dtype=jnp.float32)

    # Deterministic synthetic parameters.
    # PyTorch nn.Linear(dim, 3*dim_out): weight (3*dim_out, dim); we store the transpose.
    params = {
        "w_qkv": 0.05 * jax.random.normal(k_wq, (dim, 3 * dim_out), dtype=jnp.float32),
        "b_qkv": 0.01 * jax.random.normal(k_bq, (3 * dim_out,), dtype=jnp.float32),
        "w_proj": 0.05 * jax.random.normal(k_wp, (dim_out, dim_out), dtype=jnp.float32),
        "b_proj": 0.01 * jax.random.normal(k_bp, (dim_out,), dtype=jnp.float32),
    }

    out = multi_scale_attention_forward(x, params, num_heads)
    out = jax.block_until_ready(out)

    ref = reference_forward(x, params, num_heads)
    assert out.shape == (B, H, W, dim_out)
    assert jnp.allclose(out, ref, atol=2e-3, rtol=2e-3), "mismatch vs reference"

    print("KERNEL_OK")
</pallas_src>

<mosaic_0001>
module attributes {stable_mosaic.version = 11 : i64} {
  func.func @_linear_kernel(%arg0: i32, %arg1: i32, %arg2: memref<128x32xf32, #tpu.memory_space<vmem>>, %arg3: memref<32x96xf32, #tpu.memory_space<vmem>>, %arg4: memref<1x96xf32, #tpu.memory_space<vmem>>, %arg5: memref<128x96xf32, #tpu.memory_space<vmem>>) attributes {dimension_semantics = [#tpu.dimension_semantics<parallel>, #tpu.dimension_semantics<parallel>], iteration_bounds = array<i64: 1, 1>, scalar_prefetch = 0 : i64, scratch_operands = 0 : i64, tpu.core_type = #tpu.core_type<tc>, window_params = [{transform_indices = @transform_0, window_bounds = array<i64: 128, 32>}, {transform_indices = @transform_1, window_bounds = array<i64: 32, 96>}, {transform_indices = @transform_2, window_bounds = array<i64: 1, 96>}, {transform_indices = @transform_3, window_bounds = array<i64: 128, 96>}]} {
    %c0 = arith.constant 0 : index
    %c0_0 = arith.constant 0 : index
    %0 = vector.load %arg2[%c0, %c0_0] : memref<128x32xf32, #tpu.memory_space<vmem>>, vector<128x32xf32>
    %c0_1 = arith.constant 0 : index
    %c0_2 = arith.constant 0 : index
    %1 = vector.load %arg3[%c0_1, %c0_2] : memref<32x96xf32, #tpu.memory_space<vmem>>, vector<32x96xf32>
    %cst = arith.constant dense<0.000000e+00> : vector<128x96xf32>
    %2 = tpu.matmul %0, %1, %cst {dimension_numbers = #tpu.dot_dimension_numbers<[1], [0], [0], [1], [0, 0, 1, 1], [], []>} : vector<128x32xf32>, vector<32x96xf32>, vector<128x96xf32> -> vector<128x96xf32>
    %c0_3 = arith.constant 0 : index
    %c0_4 = arith.constant 0 : index
    %3 = vector.load %arg4[%c0_3, %c0_4] : memref<1x96xf32, #tpu.memory_space<vmem>>, vector<1x96xf32>
    %4 = vector.broadcast %3 : vector<1x96xf32> to vector<128x96xf32>
    %5 = arith.addf %2, %4 : vector<128x96xf32>
    %c0_5 = arith.constant 0 : index
    %c0_6 = arith.constant 0 : index
    %6 = vector.load %arg5[%c0_5, %c0_6] : memref<128x96xf32, #tpu.memory_space<vmem>>, vector<128x96xf32>
    tpu.vector_store %arg5[%c0_5, %c0_6], %5 {strides = array<i32>} : memref<128x96xf32, #tpu.memory_space<vmem>>, vector<128x96xf32>,
    return
  }
  func.func @transform_0(%arg0: i32, %arg1: i32) -> (i32, i32) {
    %c0_i32 = arith.constant 0 : i32
    %c0_i32_0 = arith.constant 0 : i32
    return %arg0, %c0_i32 : i32, i32
  }
  func.func @transform_1(%arg0: i32, %arg1: i32) -> (i32, i32) {
    %c0_i32 = arith.constant 0 : i32
    %c0_i32_0 = arith.constant 0 : i32
    return %c0_i32, %arg1 : i32, i32
  }
  func.func @transform_2(%arg0: i32, %arg1: i32) -> (i32, i32) {
    %c0_i32 = arith.constant 0 : i32
    %c0_i32_0 = arith.constant 0 : i32
    return %c0_i32, %arg1 : i32, i32
  }
  func.func @transform_3(%arg0: i32, %arg1: i32) -> (i32, i32) {
    %c0_i32 = arith.constant 0 : i32
    return %arg0, %arg1 : i32, i32
  }
}

</mosaic_0001>

<llo_original>
// kernel: tpu_custom_call.1
$region0: #{tpu_custom_call.1}
  #allocation0 [shape = 'u32[]', space=smem, size = 0x4, offset = 0x4, fixed_abs, tag = 'smem constant byte address 0x4 - core index']
  #allocation1 [shape = 'u32[144,128]{1,0:T(1,128)}', space=vmem, size = 0x12000, scoped, tag = 'internal scratch']
  %s0 = inlined_call_operand.vmem [shape: f32[128,32], index: 0, kind: input, shape index: {}]
  %s1 = inlined_call_operand.vmem [shape: f32[32,96], index: 1, kind: input, shape index: {}]
  %s2 = inlined_call_operand.vmem [shape: f32[1,96], index: 2, kind: input, shape index: {}]
  %s3 = inlined_call_operand.vmem [shape: f32[128,96], index: 3, kind: output, shape index: {}]
  %s4 = sld [smem:[#allocation0]]
  $region22: #{tpu_custom_call.1} parent=0
    _
  %s6 = ssub.s32 1, %s4
  %s7 = scalar_select 0, %s6, %s4
  // Predicated region
  $region2: #{tpu_custom_call.1} parent=0 // pred_check
    _
  $region3: #{tpu_custom_call.1} parent=0 // pred_check_branch
    %9 = sbr.rel (0) target = $region5
  $region4: #{tpu_custom_call.1} parent=0 // pred_region
    _
  $region5: #{tpu_custom_call.1} parent=0 // pred_fallthru
    _
  // Predicated region
  $region6: #{tpu_custom_call.1} parent=0 // pred_check
    _
  $region7: #{tpu_custom_call.1} parent=0 // pred_check_branch
    %11 = sbr.rel (0) target = $region9
  $region8: #{tpu_custom_call.1} parent=0 // pred_region
    _
  $region9: #{tpu_custom_call.1} parent=0 // pred_fallthru
    _
  // Predicated region
  $region10: #{tpu_custom_call.1} parent=0 // pred_check
    _
  $region11: #{tpu_custom_call.1} parent=0 // pred_check_branch
    %13 = sbr.rel (0) target = $region13
  $region12: #{tpu_custom_call.1} parent=0 // pred_region
    _
  $region13: #{tpu_custom_call.1} parent=0 // pred_fallthru
    _
  %v14 = vld [vmem:[%s0] sm:$0xff]
  %v15 = vld [vmem:[%s0 + $0x8] sm:$0xff]
  %v16 = vld [vmem:[%s0 + $0x10] sm:$0xff]
  %v17 = vld [vmem:[%s0 + $0x18] sm:$0xff]
  %v18 = vld [vmem:[%s0 + $0x20] sm:$0xff]
  %v19 = vld [vmem:[%s0 + $0x28] sm:$0xff]
  %v20 = vld [vmem:[%s0 + $0x30] sm:$0xff]
  %v21 = vld [vmem:[%s0 + $0x38] sm:$0xff]
  %v22 = vld [vmem:[%s0 + $0x40] sm:$0xff]
  %v23 = vld [vmem:[%s0 + $0x48] sm:$0xff]
  %v24 = vld [vmem:[%s0 + $0x50] sm:$0xff]
  %v25 = vld [vmem:[%s0 + $0x58] sm:$0xff]
  %v26 = vld [vmem:[%s0 + $0x60] sm:$0xff]
  %v27 = vld [vmem:[%s0 + $0x68] sm:$0xff]
  %v28 = vld [vmem:[%s0 + $0x70] sm:$0xff]
  %v29 = vld [vmem:[%s0 + $0x78] sm:$0xff]
  %v30 = vld [vmem:[%s1] sm:$0xff]
  %v31 = vld [vmem:[%s1 + $0x8] sm:$0xff]
  %v32 = vld [vmem:[%s1 + $0x10] sm:$0xff]
  %v33 = vld [vmem:[%s1 + $0x18] sm:$0xff]
  %v34 = vld [vmem:[%s2] sm:$0x1]
  %v36 = vlaneseq
  %v37 = vshrl.u32 %v36, 7
  %v38 = vsub.s32 0, %v37
  %v39 = vrot.slane %v34, %v38
  %vm41 = vcmask 261120
  %v43 = vsel %vm41, %v14, 0
  %v46 = vsel %vm41, %v15, 0
  %v49 = vsel %vm41, %v16, 0
  %v52 = vsel %vm41, %v17, 0
  %v55 = vsel %vm41, %v18, 0
  %v58 = vsel %vm41, %v19, 0
  %v61 = vsel %vm41, %v20, 0
  %v64 = vsel %vm41, %v21, 0
  %v67 = vsel %vm41, %v22, 0
  %v70 = vsel %vm41, %v23, 0
  %v73 = vsel %vm41, %v24, 0
  %v76 = vsel %vm41, %v25, 0
  %v79 = vsel %vm41, %v26, 0
  %v82 = vsel %vm41, %v27, 0
  %v85 = vsel %vm41, %v28, 0
  %v88 = vsel %vm41, %v29, 0
  %90 = vmatprep.subr.mxu0 0.0
  %91 = vmatpush1.msra.mxu0 %v30
  %92 = vmatprep.subr.mxu0 0.0
  %93 = vmatpush1.msra.mxu0 %v31
  %94 = vmatprep.subr.mxu0 0.0
  %95 = vmatpush1.msra.mxu0 %v32
  %96 = vmatprep.subr.mxu0 0.0
  %97 = vmatpush1.msra.mxu0 %v33
  %98 = vmatprep.subr.mxu0 0.0
  %99 = vmatpush1.msra.mxu0 0.0
  %100 = vmatprep.subr.mxu0 0.0
  %101 = vmatpush1.msra.mxu0 0.0
  %102 = vmatprep.subr.mxu0 0.0
  %103 = vmatpush1.msra.mxu0 0.0
  %104 = vmatprep.subr.mxu0 0.0
  %105 = vmatpush1.msra.mxu0 0.0
  %106 = vmatprep.subr.mxu0 0.0
  %107 = vmatpush1.msra.mxu0 0.0
  %108 = vmatprep.subr.mxu0 0.0
  %109 = vmatpush1.msra.mxu0 0.0
  %110 = vmatprep.subr.mxu0 0.0
  %111 = vmatpush1.msra.mxu0 0.0
  %112 = vmatprep.subr.mxu0 0.0
  %113 = vmatpush1.msra.mxu0 0.0
  %114 = vmatprep.subr.mxu0 0.0
  %115 = vmatpush1.msra.mxu0 0.0
  %116 = vmatprep.subr.mxu0 0.0
  %117 = vmatpush1.msra.mxu0 0.0
  %118 = vmatprep.subr.mxu0 0.0
  %119 = vmatpush1.msra.mxu0 0.0
  %120 = vmatprep.subr.mxu0 0.0
  %121 = vmatpush1.msra.mxu0 0.0
  %122 = vmatprep.subr.mxu0 0.0
  %123 = vmatpush1.msra.mxu0 0.0
  %124 = vmatprep.subr.mxu0 0.0
  %125 = vmatpush1.msra.mxu0 0.0
  %126 = vmatprep.subr.mxu0 0.0
  %127 = vmatpush1.msra.mxu0 0.0
  %128 = vmatprep.subr.mxu0 0.0
  %129 = vmatpush1.msra.mxu0 0.0
  %130 = vmatprep.subr.mxu0 0.0
  %131 = vmatpush1.msra.mxu0 0.0
  %132 = vmatprep.subr.mxu0 0.0
  %133 = vmatpush1.msra.mxu0 0.0
  %134 = vmatprep.subr.mxu0 0.0
  %135 = vmatpush1.msra.mxu0 0.0
  %136 = vmatprep.subr.mxu0 0.0
  %137 = vmatpush1.msra.mxu0 0.0
  %138 = vmatprep.subr.mxu0 0.0
  %139 = vmatpush1.msra.mxu0 0.0
  %140 = vmatprep.subr.mxu0 0.0
  %141 = vmatpush1.msra.mxu0 0.0
  %142 = vmatprep.subr.mxu0 0.0
  %143 = vmatpush1.msra.mxu0 0.0
  %144 = vmatprep.subr.mxu0 0.0
  %145 = vmatpush1.msra.mxu0 0.0
  %146 = vmatprep.subr.mxu0 0.0
  %147 = vmatpush1.msra.mxu0 0.0
  %148 = vmatprep.subr.mxu0 0.0
  %149 = vmatpush1.msra.mxu0 0.0
  %150 = vmatprep.subr.mxu0 0.0
  %151 = vmatpush1.msra.mxu0 0.0
  %152 = vmatprep.subr.mxu0 0.0
  %153 = vmatpush1.msra.mxu0 0.0
  %154 = vmatprep.mubr.f32.mxu0 0.0
  %155 = vmatmul.mubr.f32.gmra.mrb[0].mxu0 %v43
  %v156 = vpop.f32.mrb[0].mxu0
  %v157 = vadd.f32 %v39, %v156
  %v158 = vpop.f32.mrb[0].mxu0
  %159 = vmatprep.mubr.f32.mxu0 0.0
  %160 = vmatmul.mubr.f32.gmra.mrb[0].mxu0 %v46
  %v161 = vpop.f32.mrb[0].mxu0
  %v162 = vadd.f32 %v39, %v161
  %v163 = vpop.f32.mrb[0].mxu0
  %164 = vmatprep.mubr.f32.mxu0 0.0
  %165 = vmatmul.mubr.f32.gmra.mrb[0].mxu0 %v49
  %v166 = vpop.f32.mrb[0].mxu0
  %v167 = vadd.f32 %v39, %v166
  %v168 = vpop.f32.mrb[0].mxu0
  %169 = vmatprep.mubr.f32.mxu0 0.0
  %170 = vmatmul.mubr.f32.gmra.mrb[0].mxu0 %v52
  %v171 = vpop.f32.mrb[0].mxu0
  %v172 = vadd.f32 %v39, %v171
  %v173 = vpop.f32.mrb[0].mxu0
  %174 = vmatprep.mubr.f32.mxu0 0.0
  %175 = vmatmul.mubr.f32.gmra.mrb[0].mxu0 %v55
  %v176 = vpop.f32.mrb[0].mxu0
  %v177 = vadd.f32 %v39, %v176
  %v178 = vpop.f32.mrb[0].mxu0
  %179 = vmatprep.mubr.f32.mxu0 0.0
  %180 = vmatmul.mubr.f32.gmra.mrb[0].mxu0 %v58
  %v181 = vpop.f32.mrb[0].mxu0
  %v182 = vadd.f32 %v39, %v181
  %v183 = vpop.f32.mrb[0].mxu0
  %184 = vmatprep.mubr.f32.mxu0 0.0
  %185 = vmatmul.mubr.f32.gmra.mrb[0].mxu0 %v61
  %v186 = vpop.f32.mrb[0].mxu0
  %v187 = vadd.f32 %v39, %v186
  %v188 = vpop.f32.mrb[0].mxu0
  %189 = vmatprep.mubr.f32.mxu0 0.0
  %190 = vmatmul.mubr.f32.gmra.mrb[0].mxu0 %v64
  %v191 = vpop.f32.mrb[0].mxu0
  %v192 = vadd.f32 %v39, %v191
  %v193 = vpop.f32.mrb[0].mxu0
  %194 = vmatprep.mubr.f32.mxu0 0.0
  %195 = vmatmul.mubr.f32.gmra.mrb[0].mxu0 %v67
  %v196 = vpop.f32.mrb[0].mxu0
  %v197 = vadd.f32 %v39, %v196
  %v198 = vpop.f32.mrb[0].mxu0
  %199 = vmatprep.mubr.f32.mxu0 0.0
  %200 = vmatmul.mubr.f32.gmra.mrb[0].mxu0 %v70
  %v201 = vpop.f32.mrb[0].mxu0
  %v202 = vadd.f32 %v39, %v201
  %v203 = vpop.f32.mrb[0].mxu0
  %204 = vmatprep.mubr.f32.mxu0 0.0
  %205 = vmatmul.mubr.f32.gmra.mrb[0].mxu0 %v73
  %v206 = vpop.f32.mrb[0].mxu0
  %v207 = vadd.f32 %v39, %v206
  %v208 = vpop.f32.mrb[0].mxu0
  %209 = vmatprep.mubr.f32.mxu0 0.0
  %210 = vmatmul.mubr.f32.gmra.mrb[0].mxu0 %v76
  %v211 = vpop.f32.mrb[0].mxu0
  %v212 = vadd.f32 %v39, %v211
  %v213 = vpop.f32.mrb[0].mxu0
  %214 = vmatprep.mubr.f32.mxu0 0.0
  %215 = vmatmul.mubr.f32.gmra.mrb[0].mxu0 %v79
  %v216 = vpop.f32.mrb[0].mxu0
  %v217 = vadd.f32 %v39, %v216
  %v218 = vpop.f32.mrb[0].mxu0
  %219 = vmatprep.mubr.f32.mxu0 0.0
  %220 = vmatmul.mubr.f32.gmra.mrb[0].mxu0 %v82
  %v221 = vpop.f32.mrb[0].mxu0
  %v222 = vadd.f32 %v39, %v221
  %v223 = vpop.f32.mrb[0].mxu0
  %224 = vmatprep.mubr.f32.mxu0 0.0
  %225 = vmatmul.mubr.f32.gmra.mrb[0].mxu0 %v85
  %v226 = vpop.f32.mrb[0].mxu0
  %v227 = vadd.f32 %v39, %v226
  %v228 = vpop.f32.mrb[0].mxu0
  %229 = vmatprep.mubr.f32.mxu0 0.0
  %230 = vmatmul.mubr.f32.gmra.mrb[0].mxu0 %v88
  %v231 = vpop.f32.mrb[0].mxu0
  %v232 = vadd.f32 %v39, %v231
  %v233 = vpop.f32.mrb[0].mxu0
  %234 = vdwg.mxu0
  %vm235 = vcmask 785408
  %236 = vst.msk [vmem:[%s3] sm:$0xff] %vm235, %v157
  %237 = vst.msk [vmem:[%s3 + $0x8] sm:$0xff] %vm235, %v162
  %238 = vst.msk [vmem:[%s3 + $0x10] sm:$0xff] %vm235, %v167
  %239 = vst.msk [vmem:[%s3 + $0x18] sm:$0xff] %vm235, %v172
  %240 = vst.msk [vmem:[%s3 + $0x20] sm:$0xff] %vm235, %v177
  %241 = vst.msk [vmem:[%s3 + $0x28] sm:$0xff] %vm235, %v182
  %242 = vst.msk [vmem:[%s3 + $0x30] sm:$0xff] %vm235, %v187
  %243 = vst.msk [vmem:[%s3 + $0x38] sm:$0xff] %vm235, %v192
  %244 = vst.msk [vmem:[%s3 + $0x40] sm:$0xff] %vm235, %v197
  %245 = vst.msk [vmem:[%s3 + $0x48] sm:$0xff] %vm235, %v202
  %246 = vst.msk [vmem:[%s3 + $0x50] sm:$0xff] %vm235, %v207
  %247 = vst.msk [vmem:[%s3 + $0x58] sm:$0xff] %vm235, %v212
  %248 = vst.msk [vmem:[%s3 + $0x60] sm:$0xff] %vm235, %v217
  %249 = vst.msk [vmem:[%s3 + $0x68] sm:$0xff] %vm235, %v222
  %250 = vst.msk [vmem:[%s3 + $0x70] sm:$0xff] %vm235, %v227
  %251 = vst.msk [vmem:[%s3 + $0x78] sm:$0xff] %vm235, %v232
  // Predicated region
  $region14: #{tpu_custom_call.1} parent=0 // pred_check
    _
  $region15: #{tpu_custom_call.1} parent=0 // pred_check_branch
    %253 = sbr.rel (0) target = $region17
  $region16: #{tpu_custom_call.1} parent=0 // pred_region
    _
  $region17: #{tpu_custom_call.1} parent=0 // pred_fallthru
    _
  // Predicated region
  $region18: #{tpu_custom_call.1} parent=0 // pred_check
    _
  $region19: #{tpu_custom_call.1} parent=0 // pred_check_branch
    %255 = sbr.rel (0) target = $region21
  $region20: #{tpu_custom_call.1} parent=0 // pred_region
    _
  $region21: #{tpu_custom_call.1} parent=0 // pred_fallthru
    _

</llo_original>
